<compile_context>
chip_gen: v7x
topology: tpu7x:2x2x1
jax: 0.10.0
libtpu: 0.0.40
codegen_flags: <defaults>
</compile_context>

<pallas_src>
import functools

import jax
import jax.numpy as jnp
from jax.experimental import pallas as pl
from jax.experimental.pallas import tpu as pltpu


def _round_up(x, m):
    return ((x + m - 1) // m) * m


def _zeropad1d_kernel(x_ref, o_ref, *, pad_l, pad_r):
    rows = o_ref.shape[0]
    parts = []
    if pad_l > 0:
        parts.append(jnp.zeros((rows, pad_l), dtype=o_ref.dtype))
    parts.append(x_ref[...])
    if pad_r > 0:
        parts.append(jnp.zeros((rows, pad_r), dtype=o_ref.dtype))
    # One full-tile, unmasked store; the lane-shift work from the concat lands
    # on the XLU, which has slack in this mem-bound copy.
    tile = parts[0] if len(parts) == 1 else jnp.concatenate(parts, axis=-1)
    o_ref[...] = tile


def _tpu_generation_params():
    """(per-step VMEM budget bytes, vmem_limit_bytes, tensorcores per chip)."""
    mib = 1024 * 1024
    try:
        info = pltpu.get_tpu_info()
        vmem_cap = int(getattr(info, "vmem_capacity_bytes", 0) or 0)
    except Exception:
        vmem_cap = 0
    if vmem_cap >= 100 * mib:
        # v5e / v6e: 128 MiB VMEM, single TensorCore — big streaming tiles.
        return 40 * mib, 96 * mib, 1
    # v7x (64 MiB VMEM, 2 TCs) or unknown: stay conservative.
    return 20 * mib, 48 * mib, 2


def _choose_row_block(n_rows, L, L_out, itemsize, budget_bytes, num_cores):
    """Row-block size: sublane-packed, lane-padded VMEM-bounded, core-balanced.

    Returns None when even a single sublane pack of rows exceeds the budget
    (very long L) — caller falls back to XLA pad.
    """
    # Sub-32-bit dtypes pack along sublanes: 8 rows (f32), 16 (bf16), 32 (int8).
    pack = 8 * max(1, 4 // max(1, itemsize))
    lane = 128
    # VMEM tiles are lane-padded; account with rounded-up widths and
    # double-buffering (input + output tiles, 2 buffers each).
    lp = _round_up(max(L, 1), lane)
    lop = _round_up(max(L_out, 1), lane)
    per_row_bytes = 2 * (lp + lop) * itemsize
    max_rows = budget_bytes // per_row_bytes
    if max_rows < pack:
        return None

    if num_cores <= 1 or n_rows <= pack:
        # Single TensorCore (or tiny tensor): the grid is a sequential loop, so
        # use one full-extent block when it fits; otherwise the largest packed
        # block the budget allows.
        if n_rows <= max_rows:
            return n_rows
        return max(pack, (max_rows // pack) * pack)

    # Multi-core (v7x): largest pack-multiple block within budget that yields
    # an even number of grid steps (balanced across the 2 TensorCores).
    half = _round_up(pl.cdiv(n_rows, 2), pack)
    rmax = max(pack, min((max_rows // pack) * pack, half))
    r = rmax
    while r >= pack:
        if pl.cdiv(n_rows, r) % 2 == 0:
            return r
        r -= pack
    return rmax


def zero_pad_1d(x, pad, *, small_fast_path_bytes=2 * 1024 * 1024):
    """Pallas implementation of ZeroPad1d(pad).forward(x), x: (B, C, L)."""
    pad_l, pad_r = int(pad[0]), int(pad[1])
    if pad_l < 0 or pad_r < 0:
        # TODO(synk): the torch module errors on negative pads (torch.zeros with a
        # negative size); keep that contract rather than implementing cropping.
        raise ValueError("ZeroPad1d: negative padding is not supported")

    B, C, L = x.shape

    if pad_r == 0:
        # TODO(synk): the original torch code does torch.cat([zeros, input]) with the
        # default dim=0 when pad_r == 0 (only shape-valid when pad_l == L). Reproduce
        # that quirk in plain-JAX glue rather than faking a different semantic.
        zl = jnp.zeros((B, C, pad_l), x.dtype)
        return jnp.concatenate([zl, x], axis=0)

    L_out = pad_l + L + pad_r
    itemsize = jnp.dtype(x.dtype).itemsize
    in_bytes = B * C * L * itemsize
    out_bytes = B * C * L_out * itemsize

    if in_bytes + out_bytes <= small_fast_path_bytes:
        # Launch + per-step overhead dwarfs the copy at these sizes; XLA's
        # fused pad is already at roofline.
        return jnp.pad(x, ((0, 0), (0, 0), (pad_l, pad_r)))

    budget_bytes, vmem_limit_bytes, num_cores = _tpu_generation_params()

    # Lane-dense flattened row view; these reshapes are free for contiguous NCL.
    n_rows = B * C
    rblk = _choose_row_block(n_rows, L, L_out, itemsize, budget_bytes, num_cores)
    if rblk is None:
        # TODO(synk): add a lane-axis (column) grid so extremely long rows can be
        # tiled in VMEM; until then XLA's fused pad (also a pure HBM stream)
        # handles them instead of failing to compile.
        return jnp.pad(x, ((0, 0), (0, 0), (pad_l, pad_r)))

    x2 = x.reshape(n_rows, L)
    grid = (pl.cdiv(n_rows, rblk),)

    kernel = functools.partial(_zeropad1d_kernel, pad_l=pad_l, pad_r=pad_r)

    out2 = pl.pallas_call(
        kernel,
        out_shape=jax.ShapeDtypeStruct((n_rows, L_out), x.dtype),
        grid=grid,
        in_specs=[pl.BlockSpec((rblk, L), lambda r: (r, 0))],
        out_specs=pl.BlockSpec((rblk, L_out), lambda r: (r, 0)),
        compiler_params=pltpu.CompilerParams(
            dimension_semantics=("parallel",),
            vmem_limit_bytes=vmem_limit_bytes),
        cost_estimate=pl.CostEstimate(
            flops=0, transcendentals=0, bytes_accessed=in_bytes + out_bytes),
    )(x2)
    return out2.reshape(B, C, L_out)


if __name__ == "__main__":
    key = jax.random.PRNGKey(0)
    k1, k2 = jax.random.split(key)

    # 1) Small shape, forced through the Pallas path (single full-extent block).
    B, C, L = 2, 4, 16
    pad = (3, 2)
    x = jax.random.normal(k1, (B, C, L), dtype=jnp.float32)
    out = jax.block_until_ready(zero_pad_1d(x, pad, small_fast_path_bytes=0))
    ref = jnp.pad(x, ((0, 0), (0, 0), (pad[0], pad[1])))
    assert out.shape == (B, C, L + pad[0] + pad[1]), out.shape
    assert out.dtype == x.dtype
    assert jnp.allclose(out, ref), "mismatch vs reference zero-padding (case 1)"

    # 2) Multi-block path with a partial last row block (21 rows).
    x2 = jax.random.normal(k2, (3, 7, 640), dtype=jnp.float32)
    out2 = jax.block_until_ready(zero_pad_1d(x2, (5, 7), small_fast_path_bytes=0))
    ref2 = jnp.pad(x2, ((0, 0), (0, 0), (5, 7)))
    assert jnp.allclose(out2, ref2), "mismatch vs reference zero-padding (case 2)"

    # 3) Default small-tensor fast path (plain jnp.pad).
    out3 = jax.block_until_ready(zero_pad_1d(x, pad))
    assert jnp.allclose(out3, ref), "mismatch on fast path (case 3)"

    print("KERNEL_OK")
</pallas_src>

<mosaic_0001>
module attributes {stable_mosaic.version = 11 : i64} {
  func.func @_zeropad1d_kernel(%arg0: i32, %arg1: memref<8x16xf32, #tpu.memory_space<vmem>>, %arg2: memref<8x21xf32, #tpu.memory_space<vmem>>) attributes {dimension_semantics = [#tpu.dimension_semantics<parallel>], iteration_bounds = array<i64: 1>, scalar_prefetch = 0 : i64, scratch_operands = 0 : i64, tpu.core_type = #tpu.core_type<tc>, window_params = [{transform_indices = @transform_0, window_bounds = array<i64: 8, 16>}, {transform_indices = @transform_1, window_bounds = array<i64: 8, 21>}]} {
    %cst = arith.constant 0.000000e+00 : f32
    %0 = vector.broadcast %cst : f32 to vector<8x3xf32>
    %c0 = arith.constant 0 : index
    %c0_0 = arith.constant 0 : index
    %1 = vector.load %arg1[%c0, %c0_0] : memref<8x16xf32, #tpu.memory_space<vmem>>, vector<8x16xf32>
    %cst_1 = arith.constant 0.000000e+00 : f32
    %2 = vector.broadcast %cst_1 : f32 to vector<8x2xf32>
    %3 = tpu.concatenate %0, %1, %2 in 1 : vector<8x3xf32>, vector<8x16xf32>, vector<8x2xf32> -> vector<8x21xf32>
    %c0_2 = arith.constant 0 : index
    %c0_3 = arith.constant 0 : index
    %4 = vector.load %arg2[%c0_2, %c0_3] : memref<8x21xf32, #tpu.memory_space<vmem>>, vector<8x21xf32>
    tpu.vector_store %arg2[%c0_2, %c0_3], %3 {strides = array<i32>} : memref<8x21xf32, #tpu.memory_space<vmem>>, vector<8x21xf32>,
    return
  }
  func.func @transform_0(%arg0: i32) -> (i32, i32) {
    %c0_i32 = arith.constant 0 : i32
    %c0_i32_0 = arith.constant 0 : i32
    return %arg0, %c0_i32 : i32, i32
  }
  func.func @transform_1(%arg0: i32) -> (i32, i32) {
    %c0_i32 = arith.constant 0 : i32
    %c0_i32_0 = arith.constant 0 : i32
    return %arg0, %c0_i32 : i32, i32
  }
}

</mosaic_0001>

<llo_original>
// kernel: tpu_custom_call.1
$region0: #{tpu_custom_call.1}
  #allocation0 [shape = 'u32[]', space=smem, size = 0x4, offset = 0x4, fixed_abs, tag = 'smem constant byte address 0x4 - core index']
  #allocation1 [shape = 'u32[144,128]{1,0:T(1,128)}', space=vmem, size = 0x12000, scoped, tag = 'internal scratch']
  %s0 = inlined_call_operand.hbm [shape: f32[8,16], index: 0, kind: input, shape index: {}]
  %s1 = inlined_call_operand.hbm [shape: f32[8,21], index: 1, kind: output, shape index: {}]
  %s2 = sld [smem:[#allocation0]]
  $region18: #{tpu_custom_call.1} parent=0
    _
  %s4 = ssub.s32 1, %s2
  %s5 = scalar_select 0, %s4, %s2
  $region1: #{tpu_custom_call.1} parent=0
    #allocation2 [shape = 'u8[4096]{0}', space=vmem, size = 0x1000, scoped, tag = 'input window, operand 0, single buffered']
    #allocation3 [shape = 's32[1]{0}', space=sflag, size = 0x4, scoped, tag = 'scoped memory for tpu_custom_call.1']
    #allocation4 [shape = 's32[1]{0}', space=sflag, size = 0x4, scoped, tag = 'scoped memory for tpu_custom_call.1']
    #allocation5 [shape = 'u8[4096]{0}', space=vmem, size = 0x1000, scoped, tag = 'output window, operand 0, single buffered']
    %6 = vsyncpa [#allocation3], 0
    %7 = vsyncpa [#allocation4], 0
    // Predicated region
    $region2: #{tpu_custom_call.1} parent=1 // pred_check
      _
    $region3: #{tpu_custom_call.1} parent=1 // pred_check_branch
      %9 = sbr.rel (0) target = $region5
    $region4: #{tpu_custom_call.1} parent=1 // pred_region
      %s11 = ssub.s32 128, 128
      %12 = vsyncadd [#allocation3], %s11
      %s14 = sshll.u32 [#allocation2], 4
      %s15 = int_to_ptr.vmem [resolvable:$true] %s14
      %17 = dma.hbm_to_vmem [thread:$0]  %s0, 128, %s15, [#allocation3]
    $region5: #{tpu_custom_call.1} parent=1 // pred_fallthru
      _
    // Predicated region
    $region6: #{tpu_custom_call.1} parent=1 // pred_check
      _
    $region7: #{tpu_custom_call.1} parent=1 // pred_check_branch
      %19 = sbr.rel (0) target = $region9
    $region8: #{tpu_custom_call.1} parent=1 // pred_region
      %20 = dma.done [#allocation3], 128
    $region9: #{tpu_custom_call.1} parent=1 // pred_fallthru
      _
    %v21 = vld [vmem:[#allocation2] sm:$0xff]
    %23 = vrot.lane.b32.xlu0 %v21, 3
    %v24 = vpop.permute.xlu0 %23
    %vm26 = vcmask 23552
    %v27 = vsel %vm26, 0.0, %v24
    %vm28 = vcmask 154624
    %v29 = vsel %vm28, %v27, 0.0
    %vm30 = vcmask 171008
    %31 = vst.msk [vmem:[#allocation5] sm:$0xff] %vm30, %v29
    // Predicated region
    $region10: #{tpu_custom_call.1} parent=1 // pred_check
      _
    $region11: #{tpu_custom_call.1} parent=1 // pred_check_branch
      %33 = sbr.rel (0) target = $region13
    $region12: #{tpu_custom_call.1} parent=1 // pred_region
      %s35 = ssub.s32 128, 128
      %36 = vsyncadd [#allocation4], %s35
      %s38 = sshll.u32 [#allocation5], 4
      %s39 = int_to_ptr.vmem [resolvable:$true] %s38
      %41 = dma.vmem_to_hbm [thread:$0]  %s39, 128, %s1, [#allocation4]
    $region13: #{tpu_custom_call.1} parent=1 // pred_fallthru
      _
    // Predicated region
    $region14: #{tpu_custom_call.1} parent=1 // pred_check
      _
    $region15: #{tpu_custom_call.1} parent=1 // pred_check_branch
      %43 = sbr.rel (0) target = $region17
    $region16: #{tpu_custom_call.1} parent=1 // pred_region
      %44 = dma.done [#allocation4], 128
    $region17: #{tpu_custom_call.1} parent=1 // pred_fallthru
      _
    %45 = vsyncpa [#allocation3], 1
    %46 = vsyncpa [#allocation4], 1

</llo_original>
